<compile_context>
chip_gen: v7x
topology: tpu7x:2x2x1
jax: 0.10.0
libtpu: 0.0.40
codegen_flags: <defaults>
</compile_context>

<pallas_src>
import jax
import jax.numpy as jnp
from jax import lax
from jax.experimental import pallas as pl
from jax.experimental.pallas import tpu as pltpu


def mlp_kernel(x_ref, w1_ref, b1_ref, w2_ref, b2_ref, w3_ref, b3_ref, o_ref):
    """Whole MLP fused: 3 MXU matmuls, bias/ReLU on the VPU, sigmoid on the EUP.

    Shapes (lane-major batch, x in natural layout):
      x_ref  : (tb, D)      w1_ref : (N, D)   b1_ref : (N, 1)
      w2_ref : (N, N)       b2_ref : (N, 1)
      w3_ref : (1, N)       b3_ref : (1, 1)
      o_ref  : (1, tb)      -- lane-dense output tile
    """
    cdt = w1_ref.dtype                      # compute dtype for the MXU operands
    x = x_ref[...]                          # (tb, D), natural layout

    # Layer 1: W1 @ x^T  -- contract D on both operands, f32 accumulation.
    h = lax.dot_general(w1_ref[...], x, (((1,), (1,)), ((), ())),
                        preferred_element_type=jnp.float32)
    h = jnp.maximum(h + b1_ref[...], 0.0).astype(cdt)                # (N, tb)

    # Layer 2: Linear(N, N) + ReLU
    h = jnp.dot(w2_ref[...], h, preferred_element_type=jnp.float32)
    h = jnp.maximum(h + b2_ref[...], 0.0).astype(cdt)                # (N, tb)

    # Layer 3: Linear(N, 1) + Sigmoid (kernel is DMA-bound; tiny matmul is fine)
    logits = jnp.dot(w3_ref[...], h, preferred_element_type=jnp.float32)
    o_ref[...] = jax.nn.sigmoid(logits + b3_ref[...])                # (1, tb)


def mlp_forward(x, params, *, tb=8192, compute_dtype=jnp.float32):
    """x: (B, D) float32.  params: PyTorch-native (w1,b1,w2,b2,w3,b3),
    weights shaped (out, in), biases shaped (out,).
    compute_dtype: dtype for x/weights on the MXU (f32 or bf16); accumulation,
    biases and the epilogue stay f32."""
    w1, b1, w2, b2, w3, b3 = params
    B, D = x.shape
    N = w1.shape[0]

    # Lane-aligned batch tile, no larger than the lane-padded batch.
    B_up = pl.cdiv(B, 128) * 128
    tb = max(128, min((int(tb) // 128) * 128, B_up))
    # v7x megacore: if the batch supports it, make sure there are >= 2 parallel
    # grid steps so both TensorCores get work (no effect on v5e/v6e).
    if B_up // tb < 2 and B_up >= 256:
        tb = max(128, ((B_up // 2) // 128) * 128)
    grid = (pl.cdiv(B, tb),)

    cdt = jnp.dtype(compute_dtype)
    xk = x if x.dtype == cdt else x.astype(cdt)
    w1k, w2k, w3k = (w.astype(cdt) for w in (w1, w2, w3))
    b1c = b1.reshape(N, 1).astype(jnp.float32)
    b2c = b2.reshape(N, 1).astype(jnp.float32)
    b3c = b3.reshape(1, 1).astype(jnp.float32)

    flops = 2 * B * (D * N + N * N + N)
    bytes_accessed = (cdt.itemsize * (B * D + w1.size + w2.size + w3.size)
                      + 4 * (B + 2 * N + 1))

    out_t = pl.pallas_call(
        mlp_kernel,
        out_shape=jax.ShapeDtypeStruct((1, B), jnp.float32),
        grid=grid,
        in_specs=[
            pl.BlockSpec((tb, D), lambda i: (i, 0)),   # x tile, natural layout
            pl.BlockSpec((N, D), lambda i: (0, 0)),    # w1 (resident in VMEM)
            pl.BlockSpec((N, 1), lambda i: (0, 0)),    # b1
            pl.BlockSpec((N, N), lambda i: (0, 0)),    # w2
            pl.BlockSpec((N, 1), lambda i: (0, 0)),    # b2
            pl.BlockSpec((1, N), lambda i: (0, 0)),    # w3
            pl.BlockSpec((1, 1), lambda i: (0, 0)),    # b3
        ],
        out_specs=pl.BlockSpec((1, tb), lambda i: (0, i)),
        compiler_params=pltpu.CompilerParams(
            dimension_semantics=("parallel",),
        ),
        cost_estimate=pl.CostEstimate(
            flops=int(flops),
            transcendentals=int(B),
            bytes_accessed=int(bytes_accessed),
        ),
    )(xk, w1k, b1c, w2k, b2c, w3k, b3c)

    # (1, B) -> (B, 1): pure bitcast-style reshape, no data movement.
    return out_t.reshape(B, 1)


def init_params(key, inputs, neurons=64):
    """Deterministic init mimicking nn.Linear's U(-1/sqrt(fan_in), 1/sqrt(fan_in)).
    PyTorch-native storage: W is (out_features, in_features), b is (out_features,)."""
    ks = jax.random.split(key, 6)

    def lin(kw, kb, fan_in, fan_out):
        bound = 1.0 / jnp.sqrt(fan_in)
        w = jax.random.uniform(kw, (fan_out, fan_in), jnp.float32, -bound, bound)
        b = jax.random.uniform(kb, (fan_out,), jnp.float32, -bound, bound)
        return w, b

    w1, b1 = lin(ks[0], ks[1], inputs, neurons)
    w2, b2 = lin(ks[2], ks[3], neurons, neurons)
    w3, b3 = lin(ks[4], ks[5], neurons, 1)
    return (w1, b1, w2, b2, w3, b3)


def mlp_reference(x, params):
    """Plain-JAX reference of the PyTorch forward pass (y = x @ W.T + b)."""
    w1, b1, w2, b2, w3, b3 = params
    h = jnp.maximum(x @ w1.T + b1, 0.0)
    h = jnp.maximum(h @ w2.T + b2, 0.0)
    return jax.nn.sigmoid(h @ w3.T + b3)


if __name__ == "__main__":
    key = jax.random.PRNGKey(0)
    k_x, k_p = jax.random.split(key)

    # Small, non-tile-aligned batch: exercises the multi-step grid and the
    # partial last block (no wrapper-side pad).
    B, D, N = 200, 32, 64                    # batch=200, inputs=32, neurons=64
    x = jax.random.normal(k_x, (B, D), jnp.float32)
    params = init_params(k_p, D, N)

    ref = mlp_reference(x, params)

    # f32 path (exact semantics of the PyTorch module).
    out = jax.block_until_ready(mlp_forward(x, params, tb=8192))
    assert out.shape == (B, 1), out.shape
    assert jnp.allclose(out, ref, atol=1e-5, rtol=1e-5), "mismatch vs reference"

    # bf16 x/weights path (halves x HBM traffic, native MXU bf16 rate); the
    # looser tolerance reflects bf16 operands, not a semantics change.
    out_bf16 = jax.block_until_ready(
        mlp_forward(x, params, tb=8192, compute_dtype=jnp.bfloat16))
    assert jnp.allclose(out_bf16, ref, atol=1e-2, rtol=1e-2), "mismatch (bf16)"

    print("KERNEL_OK")
</pallas_src>

<mosaic_0001>
module attributes {stable_mosaic.version = 11 : i64} {
  func.func @mlp_kernel(%arg0: i32, %arg1: memref<128x32xf32, #tpu.memory_space<vmem>>, %arg2: memref<64x32xf32, #tpu.memory_space<vmem>>, %arg3: memref<64x1xf32, #tpu.memory_space<vmem>>, %arg4: memref<64x64xf32, #tpu.memory_space<vmem>>, %arg5: memref<64x1xf32, #tpu.memory_space<vmem>>, %arg6: memref<1x64xf32, #tpu.memory_space<vmem>>, %arg7: memref<1x1xf32, #tpu.memory_space<vmem>>, %arg8: memref<1x128xf32, #tpu.memory_space<vmem>>) attributes {dimension_semantics = [#tpu.dimension_semantics<parallel>], iteration_bounds = array<i64: 2>, scalar_prefetch = 0 : i64, scratch_operands = 0 : i64, tpu.core_type = #tpu.core_type<tc>, window_params = [{transform_indices = @transform_0, window_bounds = array<i64: 128, 32>}, {pipeline_mode = #tpu.pipeline_mode<synchronous>, transform_indices = @transform_1, window_bounds = array<i64: 64, 32>}, {pipeline_mode = #tpu.pipeline_mode<synchronous>, transform_indices = @transform_2, window_bounds = array<i64: 64, 1>}, {pipeline_mode = #tpu.pipeline_mode<synchronous>, transform_indices = @transform_3, window_bounds = array<i64: 64, 64>}, {pipeline_mode = #tpu.pipeline_mode<synchronous>, transform_indices = @transform_4, window_bounds = array<i64: 64, 1>}, {pipeline_mode = #tpu.pipeline_mode<synchronous>, transform_indices = @transform_5, window_bounds = array<i64: 1, 64>}, {pipeline_mode = #tpu.pipeline_mode<synchronous>, transform_indices = @transform_6, window_bounds = array<i64: 1, 1>}, {transform_indices = @transform_7, window_bounds = array<i64: 1, 128>}]} {
    %c0 = arith.constant 0 : index
    %c0_0 = arith.constant 0 : index
    %0 = vector.load %arg1[%c0, %c0_0] : memref<128x32xf32, #tpu.memory_space<vmem>>, vector<128x32xf32>
    %c0_1 = arith.constant 0 : index
    %c0_2 = arith.constant 0 : index
    %1 = vector.load %arg2[%c0_1, %c0_2] : memref<64x32xf32, #tpu.memory_space<vmem>>, vector<64x32xf32>
    %cst = arith.constant dense<0.000000e+00> : vector<64x128xf32>
    %2 = tpu.matmul %1, %0, %cst {dimension_numbers = #tpu.dot_dimension_numbers<[1], [1], [0], [0], [0, 0, 1, 0], [], []>} : vector<64x32xf32>, vector<128x32xf32>, vector<64x128xf32> -> vector<64x128xf32>
    %c0_3 = arith.constant 0 : index
    %c0_4 = arith.constant 0 : index
    %3 = vector.load %arg3[%c0_3, %c0_4] : memref<64x1xf32, #tpu.memory_space<vmem>>, vector<64x1xf32>
    %4 = vector.broadcast %3 : vector<64x1xf32> to vector<64x128xf32>
    %5 = arith.addf %2, %4 : vector<64x128xf32>
    %cst_5 = arith.constant 0.000000e+00 : f32
    %6 = vector.broadcast %cst_5 : f32 to vector<64x128xf32>
    %7 = arith.maximumf %5, %6 : vector<64x128xf32>
    %c0_6 = arith.constant 0 : index
    %c0_7 = arith.constant 0 : index
    %8 = vector.load %arg4[%c0_6, %c0_7] : memref<64x64xf32, #tpu.memory_space<vmem>>, vector<64x64xf32>
    %cst_8 = arith.constant dense<0.000000e+00> : vector<64x128xf32>
    %9 = tpu.matmul %8, %7, %cst_8 {dimension_numbers = #tpu.dot_dimension_numbers<[1], [0], [0], [1], [0, 0, 1, 1], [], []>} : vector<64x64xf32>, vector<64x128xf32>, vector<64x128xf32> -> vector<64x128xf32>
    %c0_9 = arith.constant 0 : index
    %c0_10 = arith.constant 0 : index
    %10 = vector.load %arg5[%c0_9, %c0_10] : memref<64x1xf32, #tpu.memory_space<vmem>>, vector<64x1xf32>
    %11 = vector.broadcast %10 : vector<64x1xf32> to vector<64x128xf32>
    %12 = arith.addf %9, %11 : vector<64x128xf32>
    %cst_11 = arith.constant 0.000000e+00 : f32
    %13 = vector.broadcast %cst_11 : f32 to vector<64x128xf32>
    %14 = arith.maximumf %12, %13 : vector<64x128xf32>
    %c0_12 = arith.constant 0 : index
    %c0_13 = arith.constant 0 : index
    %15 = vector.load %arg6[%c0_12, %c0_13] : memref<1x64xf32, #tpu.memory_space<vmem>>, vector<1x64xf32>
    %cst_14 = arith.constant dense<0.000000e+00> : vector<1x128xf32>
    %16 = tpu.matmul %15, %14, %cst_14 {dimension_numbers = #tpu.dot_dimension_numbers<[1], [0], [0], [1], [0, 0, 1, 1], [], []>} : vector<1x64xf32>, vector<64x128xf32>, vector<1x128xf32> -> vector<1x128xf32>
    %c0_15 = arith.constant 0 : index
    %c0_16 = arith.constant 0 : index
    %17 = vector.load %arg7[%c0_15, %c0_16] : memref<1x1xf32, #tpu.memory_space<vmem>>, vector<1x1xf32>
    %18 = vector.broadcast %17 : vector<1x1xf32> to vector<1x128xf32>
    %19 = arith.addf %16, %18 : vector<1x128xf32>
    %20 = arith.negf %19 : vector<1x128xf32>
    %21 = math.exp %20 : vector<1x128xf32>
    %cst_17 = arith.constant 1.000000e+00 : f32
    %22 = vector.broadcast %cst_17 : f32 to vector<1x128xf32>
    %23 = arith.addf %22, %21 : vector<1x128xf32>
    %24 = arith.divf %22, %23 : vector<1x128xf32>
    %c0_18 = arith.constant 0 : index
    %c0_19 = arith.constant 0 : index
    %25 = vector.load %arg8[%c0_18, %c0_19] : memref<1x128xf32, #tpu.memory_space<vmem>>, vector<1x128xf32>
    tpu.vector_store %arg8[%c0_18, %c0_19], %24 {strides = array<i32>} : memref<1x128xf32, #tpu.memory_space<vmem>>, vector<1x128xf32>,
    return
  }
  func.func @transform_0(%arg0: i32) -> (i32, i32) {
    %c0_i32 = arith.constant 0 : i32
    %c0_i32_0 = arith.constant 0 : i32
    return %arg0, %c0_i32 : i32, i32
  }
  func.func @transform_1(%arg0: i32) -> (i32, i32) {
    %c0_i32 = arith.constant 0 : i32
    %c0_i32_0 = arith.constant 0 : i32
    %c0_i32_1 = arith.constant 0 : i32
    return %c0_i32, %c0_i32_0 : i32, i32
  }
  func.func @transform_2(%arg0: i32) -> (i32, i32) {
    %c0_i32 = arith.constant 0 : i32
    %c0_i32_0 = arith.constant 0 : i32
    %c0_i32_1 = arith.constant 0 : i32
    return %c0_i32, %c0_i32_0 : i32, i32
  }
  func.func @transform_3(%arg0: i32) -> (i32, i32) {
    %c0_i32 = arith.constant 0 : i32
    %c0_i32_0 = arith.constant 0 : i32
    %c0_i32_1 = arith.constant 0 : i32
    return %c0_i32, %c0_i32_0 : i32, i32
  }
  func.func @transform_4(%arg0: i32) -> (i32, i32) {
    %c0_i32 = arith.constant 0 : i32
    %c0_i32_0 = arith.constant 0 : i32
    %c0_i32_1 = arith.constant 0 : i32
    return %c0_i32, %c0_i32_0 : i32, i32
  }
  func.func @transform_5(%arg0: i32) -> (i32, i32) {
    %c0_i32 = arith.constant 0 : i32
    %c0_i32_0 = arith.constant 0 : i32
    %c0_i32_1 = arith.constant 0 : i32
    return %c0_i32, %c0_i32_0 : i32, i32
  }
  func.func @transform_6(%arg0: i32) -> (i32, i32) {
    %c0_i32 = arith.constant 0 : i32
    %c0_i32_0 = arith.constant 0 : i32
    %c0_i32_1 = arith.constant 0 : i32
    return %c0_i32, %c0_i32_0 : i32, i32
  }
  func.func @transform_7(%arg0: i32) -> (i32, i32) {
    %c0_i32 = arith.constant 0 : i32
    %c0_i32_0 = arith.constant 0 : i32
    return %c0_i32, %arg0 : i32, i32
  }
}

</mosaic_0001>

<llo_original>
// kernel: tpu_custom_call.1
$region0: #{tpu_custom_call.1}
  #allocation0 [shape = 'u32[]', space=smem, size = 0x4, offset = 0x4, fixed_abs, tag = 'smem constant byte address 0x4 - core index']
  #allocation1 [shape = 'u32[144,128]{1,0:T(1,128)}', space=vmem, size = 0x12000, scoped, tag = 'internal scratch']
  #allocation2 [shape = 'f32[1,1]{1,0:T(1,128)S(1)}', space=vmem, size = 0x200, scoped, tag = 'scoped memory for tpu_custom_call.1']
  %s0 = inlined_call_operand.vmem [shape: f32[200,32], index: 0, kind: input, shape index: {}]
  %s1 = inlined_call_operand.vmem [shape: f32[64,32], index: 1, kind: input, shape index: {}]
  %s2 = inlined_call_operand.vmem [shape: f32[64,1], index: 2, kind: input, shape index: {}]
  %s3 = inlined_call_operand.vmem [shape: f32[64,64], index: 3, kind: input, shape index: {}]
  %s4 = inlined_call_operand.vmem [shape: f32[64,1], index: 4, kind: input, shape index: {}]
  %s5 = inlined_call_operand.vmem [shape: f32[1,64], index: 5, kind: input, shape index: {}]
  %s6 = inlined_call_operand.<no memory space> [shape: f32[1,1], index: 6, kind: input, shape index: {}]
  %s7 = inlined_call_operand.hbm [shape: f32[1,200], index: 7, kind: output, shape index: {}]
  %s8 = sld [smem:[#allocation0]]
  $region61: #{tpu_custom_call.1} parent=0
    _
  %s10 = ssub.s32 1, %s8
  %s11 = scalar_select 0, %s10, %s8
  %v12 = vstv %s6
  %13 = vst [vmem:[#allocation2] sm:$0x1] %v12
  $region1: #{tpu_custom_call.1} parent=0
    #allocation3 [shape = 'u8[1024]{0}', space=vmem, size = 0x400, scoped, tag = 'output window, operand 0']
    #allocation4 [shape = 's32[2]{0}', space=sflag, size = 0x8, scoped, tag = 'scoped memory for tpu_custom_call.1']
    %14 = vsyncpa [#allocation4], 0
    %s15 = scalar_lea.sflag [#allocation4], 1
    %16 = vsyncpa %s15, 0
    loop: start=0, step=1, limit=4
    $region2: #{tpu_custom_call.1} parent=1 // loop_pre_header
      _
    $region3: #{tpu_custom_call.1} parent=1 // loop_header
      %s18 = sphi 0, %s22
      %p19 = scmp.ge.s32.totalorder %s18, 4
      %s28 = sphi 0, %s30
      %s31 = sphi 0, %s28
      %s32 = sphi 0, %s31
      %s48 = sphi 0, %s32
      %s52 = sphi 0, %s52
      %s54 = sphi 0, %s52
      %s55 = sphi 0, %s54
      %s69 = sphi 0, %s55
      %s73 = sphi 0, %s73
      %s75 = sphi 0, %s73
      %s76 = sphi 0, %s75
      %s90 = sphi 0, %s76
      %s94 = sphi 0, %s94
      %s96 = sphi 0, %s94
      %s97 = sphi 0, %s96
      %s111 = sphi 0, %s97
      %s115 = sphi 0, %s115
      %s117 = sphi 0, %s115
      %s118 = sphi 0, %s117
      %s132 = sphi 0, %s118
      %s136 = sphi 0, %s136
      %s138 = sphi 0, %s136
      %s139 = sphi 0, %s138
      %s153 = sphi 0, %s139
      %s157 = sphi 0, %s157
      %s159 = sphi 0, %s157
      %s160 = sphi 0, %s159
      %s174 = sphi 0, %s160
      %s180 = sphi 0, %s182
      %s183 = sphi 0, %s180
      %s184 = sphi 0, %s183
      %s200 = sphi 0, %s184
    $region4: #{tpu_custom_call.1} parent=1 // loop_header_branch
      %21 = sbr.rel (%p19) target = $region8
    $region5: #{tpu_custom_call.1} parent=1 // loop_body
      %s23 = ssub.s32 %s18, 1
      %s24 = ssub.s32 %s18, 2
      %s25 = sadd.s32 %s18, 1
      %s26 = ssub.s32 %s18, %s25
      %p27 = scmp.eq.s32.totalorder %s26, 0
      %s29 = sadd.s32 %s28, 1
      %s30 = scalar_select %p27, %s28, %s29
      %p33 = pneg %p27
      %p34 = scmp.eq.s32.totalorder %s18, 1
      %p35 = por %p33, %p34
      %p36 = scmp.ne.s32.totalorder %s28, %s31
      %p37 = scmp.eq.s32.totalorder %s18, 0
      %p38 = por %p36, %p37
      %p39 = scmp.ne.s32.totalorder %s28, %s31
      %p40 = scmp.eq.s32.totalorder %s23, 1
      %p41 = por %p39, %p40
      %p42 = scmp.ne.s32.totalorder %s31, %s32
      %p43 = scmp.eq.s32.totalorder %s23, 0
      %p44 = por %p42, %p43
      %p45 = scmp.ne.s32.totalorder %s31, %s32
      %p46 = scmp.eq.s32.totalorder %s24, 1
      %p47 = por %p45, %p46
      %p49 = scmp.ne.s32.totalorder %s32, %s48
      %p50 = scmp.eq.s32.totalorder %s24, 0
      %p51 = por %p49, %p50
      %s53 = sadd.s32 %s52, 1
      %p56 = scmp.eq.s32.totalorder %s18, 1
      %p57 = scmp.ne.s32.totalorder %s52, %s54
      %p58 = scmp.eq.s32.totalorder %s18, 0
      %p59 = por %p57, %p58
      %p60 = scmp.ne.s32.totalorder %s52, %s54
      %p61 = scmp.eq.s32.totalorder %s23, 1
      %p62 = por %p60, %p61
      %p63 = scmp.ne.s32.totalorder %s54, %s55
      %p64 = scmp.eq.s32.totalorder %s23, 0
      %p65 = por %p63, %p64
      %p66 = scmp.ne.s32.totalorder %s54, %s55
      %p67 = scmp.eq.s32.totalorder %s24, 1
      %p68 = por %p66, %p67
      %p70 = scmp.ne.s32.totalorder %s55, %s69
      %p71 = scmp.eq.s32.totalorder %s24, 0
      %p72 = por %p70, %p71
      %s74 = sadd.s32 %s73, 1
      %p77 = scmp.eq.s32.totalorder %s18, 1
      %p78 = scmp.ne.s32.totalorder %s73, %s75
      %p79 = scmp.eq.s32.totalorder %s18, 0
      %p80 = por %p78, %p79
      %p81 = scmp.ne.s32.totalorder %s73, %s75
      %p82 = scmp.eq.s32.totalorder %s23, 1
      %p83 = por %p81, %p82
      %p84 = scmp.ne.s32.totalorder %s75, %s76
      %p85 = scmp.eq.s32.totalorder %s23, 0
      %p86 = por %p84, %p85
      %p87 = scmp.ne.s32.totalorder %s75, %s76
      %p88 = scmp.eq.s32.totalorder %s24, 1
      %p89 = por %p87, %p88
      %p91 = scmp.ne.s32.totalorder %s76, %s90
      %p92 = scmp.eq.s32.totalorder %s24, 0
      %p93 = por %p91, %p92
      %s95 = sadd.s32 %s94, 1
      %p98 = scmp.eq.s32.totalorder %s18, 1
      %p99 = scmp.ne.s32.totalorder %s94, %s96
      %p100 = scmp.eq.s32.totalorder %s18, 0
      %p101 = por %p99, %p100
      %p102 = scmp.ne.s32.totalorder %s94, %s96
      %p103 = scmp.eq.s32.totalorder %s23, 1
      %p104 = por %p102, %p103
      %p105 = scmp.ne.s32.totalorder %s96, %s97
      %p106 = scmp.eq.s32.totalorder %s23, 0
      %p107 = por %p105, %p106
      %p108 = scmp.ne.s32.totalorder %s96, %s97
      %p109 = scmp.eq.s32.totalorder %s24, 1
      %p110 = por %p108, %p109
      %p112 = scmp.ne.s32.totalorder %s97, %s111
      %p113 = scmp.eq.s32.totalorder %s24, 0
      %p114 = por %p112, %p113
      %s116 = sadd.s32 %s115, 1
      %p119 = scmp.eq.s32.totalorder %s18, 1
      %p120 = scmp.ne.s32.totalorder %s115, %s117
      %p121 = scmp.eq.s32.totalorder %s18, 0
      %p122 = por %p120, %p121
      %p123 = scmp.ne.s32.totalorder %s115, %s117
      %p124 = scmp.eq.s32.totalorder %s23, 1
      %p125 = por %p123, %p124
      %p126 = scmp.ne.s32.totalorder %s117, %s118
      %p127 = scmp.eq.s32.totalorder %s23, 0
      %p128 = por %p126, %p127
      %p129 = scmp.ne.s32.totalorder %s117, %s118
      %p130 = scmp.eq.s32.totalorder %s24, 1
      %p131 = por %p129, %p130
      %p133 = scmp.ne.s32.totalorder %s118, %s132
      %p134 = scmp.eq.s32.totalorder %s24, 0
      %p135 = por %p133, %p134
      %s137 = sadd.s32 %s136, 1
      %p140 = scmp.eq.s32.totalorder %s18, 1
      %p141 = scmp.ne.s32.totalorder %s136, %s138
      %p142 = scmp.eq.s32.totalorder %s18, 0
      %p143 = por %p141, %p142
      %p144 = scmp.ne.s32.totalorder %s136, %s138
      %p145 = scmp.eq.s32.totalorder %s23, 1
      %p146 = por %p144, %p145
      %p147 = scmp.ne.s32.totalorder %s138, %s139
      %p148 = scmp.eq.s32.totalorder %s23, 0
      %p149 = por %p147, %p148
      %p150 = scmp.ne.s32.totalorder %s138, %s139
      %p151 = scmp.eq.s32.totalorder %s24, 1
      %p152 = por %p150, %p151
      %p154 = scmp.ne.s32.totalorder %s139, %s153
      %p155 = scmp.eq.s32.totalorder %s24, 0
      %p156 = por %p154, %p155
      %s158 = sadd.s32 %s157, 1
      %p161 = scmp.eq.s32.totalorder %s18, 1
      %p162 = scmp.ne.s32.totalorder %s157, %s159
      %p163 = scmp.eq.s32.totalorder %s18, 0
      %p164 = por %p162, %p163
      %p165 = scmp.ne.s32.totalorder %s157, %s159
      %p166 = scmp.eq.s32.totalorder %s23, 1
      %p167 = por %p165, %p166
      %p168 = scmp.ne.s32.totalorder %s159, %s160
      %p169 = scmp.eq.s32.totalorder %s23, 0
      %p170 = por %p168, %p169
      %p171 = scmp.ne.s32.totalorder %s159, %s160
      %p172 = scmp.eq.s32.totalorder %s24, 1
      %p173 = por %p171, %p172
      %p175 = scmp.ne.s32.totalorder %s160, %s174
      %p176 = scmp.eq.s32.totalorder %s24, 0
      %p177 = por %p175, %p176
      %s178 = ssub.s32 %s18, %s25
      %p179 = scmp.eq.s32.totalorder %s178, 0
      %s181 = sadd.s32 %s180, 1
      %s182 = scalar_select %p179, %s180, %s181
      %p185 = pneg %p179
      %p186 = scmp.eq.s32.totalorder %s18, 1
      %p187 = por %p185, %p186
      %p188 = scmp.ne.s32.totalorder %s180, %s183
      %p189 = scmp.eq.s32.totalorder %s18, 0
      %p190 = por %p188, %p189
      %p191 = scmp.ne.s32.totalorder %s180, %s183
      %p192 = scmp.eq.s32.totalorder %s23, 1
      %p193 = por %p191, %p192
      %p194 = scmp.ne.s32.totalorder %s183, %s184
      %p195 = scmp.eq.s32.totalorder %s23, 0
      %p196 = por %p194, %p195
      %p197 = scmp.ne.s32.totalorder %s183, %s184
      %p198 = scmp.eq.s32.totalorder %s24, 1
      %p199 = por %p197, %p198
      %p201 = scmp.ne.s32.totalorder %s184, %s200
      %p202 = scmp.eq.s32.totalorder %s24, 0
      %p203 = por %p201, %p202
      %p204 = scmp.le.s32.totalorder 1, %s18
      %p205 = scmp.lt.s32.totalorder %s18, 3
      %p206 = pnand %p204, %p205
      %p207 = pneg %p206
      // Predicated region
      $region9: #{tpu_custom_call.1} parent=5 // pred_check
        _
      $region10: #{tpu_custom_call.1} parent=5 // pred_check_branch
        %209 = sbr.rel (%p206) target = $region12
      $region11: #{tpu_custom_call.1} parent=5 // pred_region
        %s210 = ssub.s32 %s18, 1
        // Predicated region
        $region13: #{tpu_custom_call.1} parent=11 // pred_check
          %p211 = pneg %p65
        $region14: #{tpu_custom_call.1} parent=11 // pred_check_branch
          %213 = sbr.rel (%p211) target = $region16
        $region15: #{tpu_custom_call.1} parent=11 // pred_region
          _
        $region16: #{tpu_custom_call.1} parent=11 // pred_fallthru
          _
        // Predicated region
        $region17: #{tpu_custom_call.1} parent=11 // pred_check
          %p214 = pneg %p86
        $region18: #{tpu_custom_call.1} parent=11 // pred_check_branch
          %216 = sbr.rel (%p214) target = $region20
        $region19: #{tpu_custom_call.1} parent=11 // pred_region
          _
        $region20: #{tpu_custom_call.1} parent=11 // pred_fallthru
          _
        // Predicated region
        $region21: #{tpu_custom_call.1} parent=11 // pred_check
          %p217 = pneg %p107
        $region22: #{tpu_custom_call.1} parent=11 // pred_check_branch
          %219 = sbr.rel (%p217) target = $region24
        $region23: #{tpu_custom_call.1} parent=11 // pred_region
          _
        $region24: #{tpu_custom_call.1} parent=11 // pred_fallthru
          _
        // Predicated region
        $region25: #{tpu_custom_call.1} parent=11 // pred_check
          %p220 = pneg %p128
        $region26: #{tpu_custom_call.1} parent=11 // pred_check_branch
          %222 = sbr.rel (%p220) target = $region28
        $region27: #{tpu_custom_call.1} parent=11 // pred_region
          _
        $region28: #{tpu_custom_call.1} parent=11 // pred_fallthru
          _
        // Predicated region
        $region29: #{tpu_custom_call.1} parent=11 // pred_check
          %p223 = pneg %p149
        $region30: #{tpu_custom_call.1} parent=11 // pred_check_branch
          %225 = sbr.rel (%p223) target = $region32
        $region31: #{tpu_custom_call.1} parent=11 // pred_region
          _
        $region32: #{tpu_custom_call.1} parent=11 // pred_fallthru
          _
        // Predicated region
        $region33: #{tpu_custom_call.1} parent=11 // pred_check
          %p226 = pneg %p170
        $region34: #{tpu_custom_call.1} parent=11 // pred_check_branch
          %228 = sbr.rel (%p226) target = $region36
        $region35: #{tpu_custom_call.1} parent=11 // pred_region
          _
        $region36: #{tpu_custom_call.1} parent=11 // pred_fallthru
          _
      $region12: #{tpu_custom_call.1} parent=5 // pred_fallthru
        _
      %p229 = scmp.lt.s32.totalorder %s18, 2
      // Predicated region
      $region37: #{tpu_custom_call.1} parent=5 // pred_check
        %p230 = pneg %p229
      $region38: #{tpu_custom_call.1} parent=5 // pred_check_branch
        %232 = sbr.rel (%p230) target = $region40
      $region39: #{tpu_custom_call.1} parent=5 // pred_region
        // Predicated region
        $region41: #{tpu_custom_call.1} parent=39 // pred_check
          %p233 = pneg %p38
        $region42: #{tpu_custom_call.1} parent=39 // pred_check_branch
          %235 = sbr.rel (%p233) target = $region44
        $region43: #{tpu_custom_call.1} parent=39 // pred_region
          %s236 = smul.u32 16, %s18
          %s237 = ssub.s32 25, %s236
          %p238 = scmp.lt.s32.totalorder %s237, 16
          %s239 = scalar_select %p238, %s237, 16
          %s240 = smul.u32 128, %s239
          %p241 = scmp.lt.s32.totalorder %s236, 24
          %s242 = scalar_select %p241, %s236, 24
          %s243 = smul.addr %s242, 8
          %s244 = scalar_lea.vmem %s0, %s243
          %s245 = smul.u32 16, %s18
          %s246 = ssub.s32 25, %s245
          %p247 = scmp.lt.s32.totalorder %s246, 16
          %s248 = scalar_select %p247, %s246, 16
          %s249 = smul.u32 128, %s248
        $region44: #{tpu_custom_call.1} parent=39 // pred_fallthru
          _
      $region40: #{tpu_custom_call.1} parent=5 // pred_fallthru
        _
      %p250 = scmp.le.s32.totalorder 1, %s18
      %p251 = scmp.lt.s32.totalorder %s18, 3
      %p252 = pnand %p250, %p251
      %p253 = pneg %p252
      // Predicated region
      $region45: #{tpu_custom_call.1} parent=5 // pred_check
        _
      $region46: #{tpu_custom_call.1} parent=5 // pred_check_branch
        %255 = sbr.rel (%p252) target = $region48
      $region47: #{tpu_custom_call.1} parent=5 // pred_region
        %s256 = ssub.s32 %s18, 1
        %s257 = smul.u32 16, %s23
        %s258 = ssub.s32 25, %s257
        %p259 = scmp.lt.s32.totalorder %s258, 16
        %s260 = scalar_select %p259, %s258, 16
        %s261 = smul.u32 128, %s260
        %p262 = scmp.lt.s32.totalorder %s257, 24
        %s263 = scalar_select %p262, %s257, 24
        %s264 = smul.addr %s263, 8
        %s265 = scalar_lea.vmem %s0, %s264
        %p266 = pneg %p44
        %p267 = pneg %p41
        %p268 = pneg %p65
        %p269 = pneg %p62
        %p270 = pneg %p86
        %p271 = pneg %p83
        %p272 = pneg %p107
        %p273 = pneg %p104
        %p274 = pneg %p128
        %p275 = pneg %p125
        %p276 = pneg %p149
        %p277 = pneg %p146
        %p278 = pneg %p170
        %p279 = pneg %p167
        %p280 = pneg %p196
        %p281 = pneg %p193
        %s282 = sand.u32 %s183, 1
        %s283 = scalar_lea.sflag [#allocation4], %s282
        %s284 = sand.u32 %s183, 1
        %s285 = scalar_lea.vmem [#allocation3], %s284
        %s286 = smul.u32 16, %s23
        %s287 = ssub.s32 25, %s286
        %p288 = scmp.lt.s32.totalorder %s287, 16
        %s289 = scalar_select %p288, %s287, 16
        %s290 = smul.u32 128, %s289
        %p291 = scmp.lt.s32.totalorder %s286, 24
        %s292 = scalar_select %p291, %s286, 24
        %s293 = smul.addr %s292, 8
        %s294 = scalar_lea.vmem %s0, %s293
        %s295 = smul.u32 16, %s23
        %s296 = ssub.s32 25, %s295
        %p297 = scmp.lt.s32.totalorder %s296, 16
        %s298 = scalar_select %p297, %s296, 16
        %s299 = smul.u32 128, %s298
        %v300 = vld [vmem:[%s294] sm:$0xff]
        %v301 = vld [vmem:[%s294 + $0x8] sm:$0xff]
        %v302 = vld [vmem:[%s294 + $0x10] sm:$0xff]
        %v303 = vld [vmem:[%s294 + $0x18] sm:$0xff]
        %v304 = vld [vmem:[%s294 + $0x20] sm:$0xff]
        %v305 = vld [vmem:[%s294 + $0x28] sm:$0xff]
        %v306 = vld [vmem:[%s294 + $0x30] sm:$0xff]
        %v307 = vld [vmem:[%s294 + $0x38] sm:$0xff]
        %v308 = vld [vmem:[%s294 + $0x40] sm:$0xff]
        %v309 = vld [vmem:[%s294 + $0x48] sm:$0xff]
        %v310 = vld [vmem:[%s294 + $0x50] sm:$0xff]
        %v311 = vld [vmem:[%s294 + $0x58] sm:$0xff]
        %v312 = vld [vmem:[%s294 + $0x60] sm:$0xff]
        %v313 = vld [vmem:[%s294 + $0x68] sm:$0xff]
        %v314 = vld [vmem:[%s294 + $0x70] sm:$0xff]
        %v315 = vld [vmem:[%s294 + $0x78] sm:$0xff]
        %v316 = vld [vmem:[%s1] sm:$0xff]
        %v317 = vld [vmem:[%s1 + $0x8] sm:$0xff]
        %v318 = vld [vmem:[%s1 + $0x10] sm:$0xff]
        %v319 = vld [vmem:[%s1 + $0x18] sm:$0xff]
        %v320 = vld [vmem:[%s1 + $0x20] sm:$0xff]
        %v321 = vld [vmem:[%s1 + $0x28] sm:$0xff]
        %v322 = vld [vmem:[%s1 + $0x30] sm:$0xff]
        %v323 = vld [vmem:[%s1 + $0x38] sm:$0xff]
        %v324 = vld [vmem:[%s2] sm:$0xff]
        %v325 = vld [vmem:[%s2 + $0x8] sm:$0xff]
        %v326 = vld [vmem:[%s2 + $0x10] sm:$0xff]
        %v327 = vld [vmem:[%s2 + $0x18] sm:$0xff]
        %v328 = vld [vmem:[%s2 + $0x20] sm:$0xff]
        %v329 = vld [vmem:[%s2 + $0x28] sm:$0xff]
        %v330 = vld [vmem:[%s2 + $0x30] sm:$0xff]
        %v331 = vld [vmem:[%s2 + $0x38] sm:$0xff]
        %333 = vset.pattern.permute.xlu0 0
        %334 = vperm.xlu0 %333, %v324
        %v335 = vpop.permute.xlu0 %334
        %338 = vset.pattern.permute.xlu0 0
        %339 = vperm.xlu0 %338, %v325
        %v340 = vpop.permute.xlu0 %339
        %343 = vset.pattern.permute.xlu0 0
        %344 = vperm.xlu0 %343, %v326
        %v345 = vpop.permute.xlu0 %344
        %348 = vset.pattern.permute.xlu0 0
        %349 = vperm.xlu0 %348, %v327
        %v350 = vpop.permute.xlu0 %349
        %353 = vset.pattern.permute.xlu0 0
        %354 = vperm.xlu0 %353, %v328
        %v355 = vpop.permute.xlu0 %354
        %358 = vset.pattern.permute.xlu0 0
        %359 = vperm.xlu0 %358, %v329
        %v360 = vpop.permute.xlu0 %359
        %363 = vset.pattern.permute.xlu0 0
        %364 = vperm.xlu0 %363, %v330
        %v365 = vpop.permute.xlu0 %364
        %368 = vset.pattern.permute.xlu0 0
        %369 = vperm.xlu0 %368, %v331
        %v370 = vpop.permute.xlu0 %369
        %vm372 = vcmask 261120
        %v374 = vsel %vm372, %v316, 0
        %v377 = vsel %vm372, %v317, 0
        %v380 = vsel %vm372, %v318, 0
        %v383 = vsel %vm372, %v319, 0
        %v386 = vsel %vm372, %v320, 0
        %v389 = vsel %vm372, %v321, 0
        %v392 = vsel %vm372, %v322, 0
        %v395 = vsel %vm372, %v323, 0
        %v398 = vsel %vm372, %v300, 0
        %v401 = vsel %vm372, %v301, 0
        %v404 = vsel %vm372, %v302, 0
        %v407 = vsel %vm372, %v303, 0
        %v410 = vsel %vm372, %v304, 0
        %v413 = vsel %vm372, %v305, 0
        %v416 = vsel %vm372, %v306, 0
        %v419 = vsel %vm372, %v307, 0
        %v422 = vsel %vm372, %v308, 0
        %v425 = vsel %vm372, %v309, 0
        %v428 = vsel %vm372, %v310, 0
        %v431 = vsel %vm372, %v311, 0
        %v434 = vsel %vm372, %v312, 0
        %v437 = vsel %vm372, %v313, 0
        %v440 = vsel %vm372, %v314, 0
        %v443 = vsel %vm372, %v315, 0
        %445 = vmatprep.subr.mxu0 0.0
        %446 = vmatpush1.xpose.msra.mxu0 %v398
        %447 = vmatprep.subr.mxu0 0.0
        %448 = vmatpush1.xpose.msra.mxu0 %v401
        %449 = vmatprep.subr.mxu0 0.0
        %450 = vmatpush1.xpose.msra.mxu0 %v404
        %451 = vmatprep.subr.mxu0 0.0
        %452 = vmatpush1.xpose.msra.mxu0 %v407
        %453 = vmatprep.subr.mxu0 0.0
        %454 = vmatpush1.xpose.msra.mxu0 %v410
        %455 = vmatprep.subr.mxu0 0.0
        %456 = vmatpush1.xpose.msra.mxu0 %v413
        %457 = vmatprep.subr.mxu0 0.0
        %458 = vmatpush1.xpose.msra.mxu0 %v416
        %459 = vmatprep.subr.mxu0 0.0
        %460 = vmatpush1.xpose.msra.mxu0 %v419
        %461 = vmatprep.subr.mxu0 0.0
        %462 = vmatpush1.xpose.msra.mxu0 %v422
        %463 = vmatprep.subr.mxu0 0.0
        %464 = vmatpush1.xpose.msra.mxu0 %v425
        %465 = vmatprep.subr.mxu0 0.0
        %466 = vmatpush1.xpose.msra.mxu0 %v428
        %467 = vmatprep.subr.mxu0 0.0
        %468 = vmatpush1.xpose.msra.mxu0 %v431
        %469 = vmatprep.subr.mxu0 0.0
        %470 = vmatpush1.xpose.msra.mxu0 %v434
        %471 = vmatprep.subr.mxu0 0.0
        %472 = vmatpush1.xpose.msra.mxu0 %v437
        %473 = vmatprep.subr.mxu0 0.0
        %474 = vmatpush1.xpose.msra.mxu0 %v440
        %475 = vmatprep.subr.mxu0 0.0
        %476 = vmatpush1.xpose.msra.mxu0 %v443
        %477 = vmatprep.subr.mxu0 0.0
        %478 = vmatpush1.xpose.msra.mxu0 0.0
        %479 = vmatprep.subr.mxu0 0.0
        %480 = vmatpush1.xpose.msra.mxu0 0.0
        %481 = vmatprep.subr.mxu0 0.0
        %482 = vmatpush1.xpose.msra.mxu0 0.0
        %483 = vmatprep.subr.mxu0 0.0
        %484 = vmatpush1.xpose.msra.mxu0 0.0
        %485 = vmatprep.subr.mxu0 0.0
        %486 = vmatpush1.xpose.msra.mxu0 0.0
        %487 = vmatprep.subr.mxu0 0.0
        %488 = vmatpush1.xpose.msra.mxu0 0.0
        %489 = vmatprep.subr.mxu0 0.0
        %490 = vmatpush1.xpose.msra.mxu0 0.0
        %491 = vmatprep.subr.mxu0 0.0
        %492 = vmatpush1.xpose.msra.mxu0 0.0
        %493 = vmatprep.subr.mxu0 0.0
        %494 = vmatpush1.xpose.msra.mxu0 0.0
        %495 = vmatprep.subr.mxu0 0.0
        %496 = vmatpush1.xpose.msra.mxu0 0.0
        %497 = vmatprep.subr.mxu0 0.0
        %498 = vmatpush1.xpose.msra.mxu0 0.0
        %499 = vmatprep.subr.mxu0 0.0
        %500 = vmatpush1.xpose.msra.mxu0 0.0
        %501 = vmatprep.subr.mxu0 0.0
        %502 = vmatpush1.xpose.msra.mxu0 0.0
        %503 = vmatprep.subr.mxu0 0.0
        %504 = vmatpush1.xpose.msra.mxu0 0.0
        %505 = vmatprep.subr.mxu0 0.0
        %506 = vmatpush1.xpose.msra.mxu0 0.0
        %507 = vmatprep.subr.mxu0 0.0
        %508 = vmatpush1.xpose.msra.mxu0 0.0
        %509 = vmatprep.mubr.f32.mxu0 0.0
        %510 = vmatmul.mubr.f32.gmra.mrb[0].mxu0 %v374
        %v511 = vpop.f32.mrb[0].mxu0
        %v512 = vadd.f32 %v335, %v511
        %v513 = vpop.f32.mrb[0].mxu0
        %514 = vmatprep.mubr.f32.mxu0 0.0
        %515 = vmatmul.mubr.f32.gmra.mrb[0].mxu0 %v377
        %v516 = vpop.f32.mrb[0].mxu0
        %v517 = vadd.f32 %v340, %v516
        %v518 = vpop.f32.mrb[0].mxu0
        %519 = vmatprep.mubr.f32.mxu0 0.0
        %520 = vmatmul.mubr.f32.gmra.mrb[0].mxu0 %v380
        %v521 = vpop.f32.mrb[0].mxu0
        %v522 = vadd.f32 %v345, %v521
        %v523 = vpop.f32.mrb[0].mxu0
        %524 = vmatprep.mubr.f32.mxu0 0.0
        %525 = vmatmul.mubr.f32.gmra.mrb[0].mxu0 %v383
        %v526 = vpop.f32.mrb[0].mxu0
        %v527 = vadd.f32 %v350, %v526
        %v528 = vpop.f32.mrb[0].mxu0
        %529 = vmatprep.mubr.f32.mxu0 0.0
        %530 = vmatmul.mubr.f32.gmra.mrb[0].mxu0 %v386
        %v531 = vpop.f32.mrb[0].mxu0
        %v532 = vadd.f32 %v355, %v531
        %v533 = vpop.f32.mrb[0].mxu0
        %534 = vmatprep.mubr.f32.mxu0 0.0
        %535 = vmatmul.mubr.f32.gmra.mrb[0].mxu0 %v389
        %v536 = vpop.f32.mrb[0].mxu0
        %v537 = vadd.f32 %v360, %v536
        %v538 = vpop.f32.mrb[0].mxu0
        %539 = vmatprep.mubr.f32.mxu0 0.0
        %540 = vmatmul.mubr.f32.gmra.mrb[0].mxu0 %v392
        %v541 = vpop.f32.mrb[0].mxu0
        %v542 = vadd.f32 %v365, %v541
        %v543 = vpop.f32.mrb[0].mxu0
        %544 = vmatprep.mubr.f32.mxu0 0.0
        %545 = vmatmul.mubr.f32.gmra.mrb[0].mxu0 %v395
        %v546 = vpop.f32.mrb[0].mxu0
        %v547 = vadd.f32 %v370, %v546
        %v548 = vpop.f32.mrb[0].mxu0
        %549 = vdwg.mxu0
        %v550 = vmax.f32 %v512, 0.0
        %v551 = vmax.f32 %v517, 0.0
        %v552 = vmax.f32 %v522, 0.0
        %v553 = vmax.f32 %v527, 0.0
        %v554 = vmax.f32 %v532, 0.0
        %v555 = vmax.f32 %v537, 0.0
        %v556 = vmax.f32 %v542, 0.0
        %v557 = vmax.f32 %v547, 0.0
        %v558 = vld [vmem:[%s3] sm:$0xff]
        %v559 = vld [vmem:[%s3 + $0x8] sm:$0xff]
        %v560 = vld [vmem:[%s3 + $0x10] sm:$0xff]
        %v561 = vld [vmem:[%s3 + $0x18] sm:$0xff]
        %v562 = vld [vmem:[%s3 + $0x20] sm:$0xff]
        %v563 = vld [vmem:[%s3 + $0x28] sm:$0xff]
        %v564 = vld [vmem:[%s3 + $0x30] sm:$0xff]
        %v565 = vld [vmem:[%s3 + $0x38] sm:$0xff]
        %v566 = vld [vmem:[%s4] sm:$0xff]
        %v567 = vld [vmem:[%s4 + $0x8] sm:$0xff]
        %v568 = vld [vmem:[%s4 + $0x10] sm:$0xff]
        %v569 = vld [vmem:[%s4 + $0x18] sm:$0xff]
        %v570 = vld [vmem:[%s4 + $0x20] sm:$0xff]
        %v571 = vld [vmem:[%s4 + $0x28] sm:$0xff]
        %v572 = vld [vmem:[%s4 + $0x30] sm:$0xff]
        %v573 = vld [vmem:[%s4 + $0x38] sm:$0xff]
        %575 = vset.pattern.permute.xlu0 0
        %576 = vperm.xlu0 %575, %v566
        %v577 = vpop.permute.xlu0 %576
        %580 = vset.pattern.permute.xlu0 0
        %581 = vperm.xlu0 %580, %v567
        %v582 = vpop.permute.xlu0 %581
        %585 = vset.pattern.permute.xlu0 0
        %586 = vperm.xlu0 %585, %v568
        %v587 = vpop.permute.xlu0 %586
        %590 = vset.pattern.permute.xlu0 0
        %591 = vperm.xlu0 %590, %v569
        %v592 = vpop.permute.xlu0 %591
        %595 = vset.pattern.permute.xlu0 0
        %596 = vperm.xlu0 %595, %v570
        %v597 = vpop.permute.xlu0 %596
        %600 = vset.pattern.permute.xlu0 0
        %601 = vperm.xlu0 %600, %v571
        %v602 = vpop.permute.xlu0 %601
        %605 = vset.pattern.permute.xlu0 0
        %606 = vperm.xlu0 %605, %v572
        %v607 = vpop.permute.xlu0 %606
        %610 = vset.pattern.permute.xlu0 0
        %611 = vperm.xlu0 %610, %v573
        %v612 = vpop.permute.xlu0 %611
        %vm614 = vcmask 523264
        %v616 = vsel %vm614, %v558, 0
        %v619 = vsel %vm614, %v559, 0
        %v622 = vsel %vm614, %v560, 0
        %v625 = vsel %vm614, %v561, 0
        %v628 = vsel %vm614, %v562, 0
        %v631 = vsel %vm614, %v563, 0
        %v634 = vsel %vm614, %v564, 0
        %v637 = vsel %vm614, %v565, 0
        %639 = vmatprep.subr.mxu0 0.0
        %640 = vmatpush1.msra.mxu0 %v550
        %641 = vmatprep.subr.mxu0 0.0
        %642 = vmatpush1.msra.mxu0 %v551
        %643 = vmatprep.subr.mxu0 0.0
        %644 = vmatpush1.msra.mxu0 %v552
        %645 = vmatprep.subr.mxu0 0.0
        %646 = vmatpush1.msra.mxu0 %v553
        %647 = vmatprep.subr.mxu0 0.0
        %648 = vmatpush1.msra.mxu0 %v554
        %649 = vmatprep.subr.mxu0 0.0
        %650 = vmatpush1.msra.mxu0 %v555
        %651 = vmatprep.subr.mxu0 0.0
        %652 = vmatpush1.msra.mxu0 %v556
        %653 = vmatprep.subr.mxu0 0.0
        %654 = vmatpush1.msra.mxu0 %v557
        %655 = vmatprep.subr.mxu0 0.0
        %656 = vmatpush1.msra.mxu0 0.0
        %657 = vmatprep.subr.mxu0 0.0
        %658 = vmatpush1.msra.mxu0 0.0
        %659 = vmatprep.subr.mxu0 0.0
        %660 = vmatpush1.msra.mxu0 0.0
        %661 = vmatprep.subr.mxu0 0.0
        %662 = vmatpush1.msra.mxu0 0.0
        %663 = vmatprep.subr.mxu0 0.0
        %664 = vmatpush1.msra.mxu0 0.0
        %665 = vmatprep.subr.mxu0 0.0
        %666 = vmatpush1.msra.mxu0 0.0
        %667 = vmatprep.subr.mxu0 0.0
        %668 = vmatpush1.msra.mxu0 0.0
        %669 = vmatprep.subr.mxu0 0.0
        %670 = vmatpush1.msra.mxu0 0.0
        %671 = vmatprep.subr.mxu0 0.0
        %672 = vmatpush1.msra.mxu0 0.0
        %673 = vmatprep.subr.mxu0 0.0
        %674 = vmatpush1.msra.mxu0 0.0
        %675 = vmatprep.subr.mxu0 0.0
        %676 = vmatpush1.msra.mxu0 0.0
        %677 = vmatprep.subr.mxu0 0.0
        %678 = vmatpush1.msra.mxu0 0.0
        %679 = vmatprep.subr.mxu0 0.0
        %680 = vmatpush1.msra.mxu0 0.0
        %681 = vmatprep.subr.mxu0 0.0
        %682 = vmatpush1.msra.mxu0 0.0
        %683 = vmatprep.subr.mxu0 0.0
        %684 = vmatpush1.msra.mxu0 0.0
        %685 = vmatprep.subr.mxu0 0.0
        %686 = vmatpush1.msra.mxu0 0.0
        %687 = vmatprep.subr.mxu0 0.0
        %688 = vmatpush1.msra.mxu0 0.0
        %689 = vmatprep.subr.mxu0 0.0
        %690 = vmatpush1.msra.mxu0 0.0
        %691 = vmatprep.subr.mxu0 0.0
        %692 = vmatpush1.msra.mxu0 0.0
        %693 = vmatprep.subr.mxu0 0.0
        %694 = vmatpush1.msra.mxu0 0.0
        %695 = vmatprep.subr.mxu0 0.0
        %696 = vmatpush1.msra.mxu0 0.0
        %697 = vmatprep.subr.mxu0 0.0
        %698 = vmatpush1.msra.mxu0 0.0
        %699 = vmatprep.subr.mxu0 0.0
        %700 = vmatpush1.msra.mxu0 0.0
        %701 = vmatprep.subr.mxu0 0.0
        %702 = vmatpush1.msra.mxu0 0.0
        %703 = vmatprep.mubr.f32.mxu0 0.0
        %704 = vmatmul.mubr.f32.gmra.mrb[0].mxu0 %v616
        %v705 = vpop.f32.mrb[0].mxu0
        %v706 = vadd.f32 %v577, %v705
        %v707 = vpop.f32.mrb[0].mxu0
        %708 = vmatprep.mubr.f32.mxu0 0.0
        %709 = vmatmul.mubr.f32.gmra.mrb[0].mxu0 %v619
        %v710 = vpop.f32.mrb[0].mxu0
        %v711 = vadd.f32 %v582, %v710
        %v712 = vpop.f32.mrb[0].mxu0
        %713 = vmatprep.mubr.f32.mxu0 0.0
        %714 = vmatmul.mubr.f32.gmra.mrb[0].mxu0 %v622
        %v715 = vpop.f32.mrb[0].mxu0
        %v716 = vadd.f32 %v587, %v715
        %v717 = vpop.f32.mrb[0].mxu0
        %718 = vmatprep.mubr.f32.mxu0 0.0
        %719 = vmatmul.mubr.f32.gmra.mrb[0].mxu0 %v625
        %v720 = vpop.f32.mrb[0].mxu0
        %v721 = vadd.f32 %v592, %v720
        %v722 = vpop.f32.mrb[0].mxu0
        %723 = vmatprep.mubr.f32.mxu0 0.0
        %724 = vmatmul.mubr.f32.gmra.mrb[0].mxu0 %v628
        %v725 = vpop.f32.mrb[0].mxu0
        %v726 = vadd.f32 %v597, %v725
        %v727 = vpop.f32.mrb[0].mxu0
        %728 = vmatprep.mubr.f32.mxu0 0.0
        %729 = vmatmul.mubr.f32.gmra.mrb[0].mxu0 %v631
        %v730 = vpop.f32.mrb[0].mxu0
        %v731 = vadd.f32 %v602, %v730
        %v732 = vpop.f32.mrb[0].mxu0
        %733 = vmatprep.mubr.f32.mxu0 0.0
        %734 = vmatmul.mubr.f32.gmra.mrb[0].mxu0 %v634
        %v735 = vpop.f32.mrb[0].mxu0
        %v736 = vadd.f32 %v607, %v735
        %v737 = vpop.f32.mrb[0].mxu0
        %738 = vmatprep.mubr.f32.mxu0 0.0
        %739 = vmatmul.mubr.f32.gmra.mrb[0].mxu0 %v637
        %v740 = vpop.f32.mrb[0].mxu0
        %v741 = vadd.f32 %v612, %v740
        %v742 = vpop.f32.mrb[0].mxu0
        %743 = vdwg.mxu0
        %v744 = vmax.f32 %v706, 0.0
        %v745 = vmax.f32 %v711, 0.0
        %v746 = vmax.f32 %v716, 0.0
        %v747 = vmax.f32 %v721, 0.0
        %v748 = vmax.f32 %v726, 0.0
        %v749 = vmax.f32 %v731, 0.0
        %v750 = vmax.f32 %v736, 0.0
        %v751 = vmax.f32 %v741, 0.0
        %v752 = vld [vmem:[%s5] sm:$0x1]
        %v753 = vld [vmem:[#allocation2] sm:$0x1]
        %755 = vset.pattern.permute.xlu0 0
        %756 = vperm.xlu0 %755, %v753
        %v757 = vpop.permute.xlu0 %756
        %v759 = vlaneseq
        %v760 = vshrl.u32 %v759, 7
        %v761 = vsub.s32 0, %v760
        %v762 = vrot.slane %v757, %v761
        %v764 = vsel %vm614, %v752, 0
        %766 = vmatprep.subr.mxu0 0.0
        %767 = vmatpush1.msra.mxu0 %v744
        %768 = vmatprep.subr.mxu0 0.0
        %769 = vmatpush1.msra.mxu0 %v745
        %770 = vmatprep.subr.mxu0 0.0
        %771 = vmatpush1.msra.mxu0 %v746
        %772 = vmatprep.subr.mxu0 0.0
        %773 = vmatpush1.msra.mxu0 %v747
        %774 = vmatprep.subr.mxu0 0.0
        %775 = vmatpush1.msra.mxu0 %v748
        %776 = vmatprep.subr.mxu0 0.0
        %777 = vmatpush1.msra.mxu0 %v749
        %778 = vmatprep.subr.mxu0 0.0
        %779 = vmatpush1.msra.mxu0 %v750
        %780 = vmatprep.subr.mxu0 0.0
        %781 = vmatpush1.msra.mxu0 %v751
        %782 = vmatprep.subr.mxu0 0.0
        %783 = vmatpush1.msra.mxu0 0.0
        %784 = vmatprep.subr.mxu0 0.0
        %785 = vmatpush1.msra.mxu0 0.0
        %786 = vmatprep.subr.mxu0 0.0
        %787 = vmatpush1.msra.mxu0 0.0
        %788 = vmatprep.subr.mxu0 0.0
        %789 = vmatpush1.msra.mxu0 0.0
        %790 = vmatprep.subr.mxu0 0.0
        %791 = vmatpush1.msra.mxu0 0.0
        %792 = vmatprep.subr.mxu0 0.0
        %793 = vmatpush1.msra.mxu0 0.0
        %794 = vmatprep.subr.mxu0 0.0
        %795 = vmatpush1.msra.mxu0 0.0
        %796 = vmatprep.subr.mxu0 0.0
        %797 = vmatpush1.msra.mxu0 0.0
        %798 = vmatprep.subr.mxu0 0.0
        %799 = vmatpush1.msra.mxu0 0.0
        %800 = vmatprep.subr.mxu0 0.0
        %801 = vmatpush1.msra.mxu0 0.0
        %802 = vmatprep.subr.mxu0 0.0
        %803 = vmatpush1.msra.mxu0 0.0
        %804 = vmatprep.subr.mxu0 0.0
        %805 = vmatpush1.msra.mxu0 0.0
        %806 = vmatprep.subr.mxu0 0.0
        %807 = vmatpush1.msra.mxu0 0.0
        %808 = vmatprep.subr.mxu0 0.0
        %809 = vmatpush1.msra.mxu0 0.0
        %810 = vmatprep.subr.mxu0 0.0
        %811 = vmatpush1.msra.mxu0 0.0
        %812 = vmatprep.subr.mxu0 0.0
        %813 = vmatpush1.msra.mxu0 0.0
        %814 = vmatprep.subr.mxu0 0.0
        %815 = vmatpush1.msra.mxu0 0.0
        %816 = vmatprep.subr.mxu0 0.0
        %817 = vmatpush1.msra.mxu0 0.0
        %818 = vmatprep.subr.mxu0 0.0
        %819 = vmatpush1.msra.mxu0 0.0
        %820 = vmatprep.subr.mxu0 0.0
        %821 = vmatpush1.msra.mxu0 0.0
        %822 = vmatprep.subr.mxu0 0.0
        %823 = vmatpush1.msra.mxu0 0.0
        %824 = vmatprep.subr.mxu0 0.0
        %825 = vmatpush1.msra.mxu0 0.0
        %826 = vmatprep.subr.mxu0 0.0
        %827 = vmatpush1.msra.mxu0 0.0
        %828 = vmatprep.subr.mxu0 0.0
        %829 = vmatpush1.msra.mxu0 0.0
        %830 = vmatprep.mubr.f32.mxu0 0.0
        %831 = vmatmul.mubr.f32.gmra.mrb[0].mxu0 %v764
        %v832 = vpop.f32.mrb[0].mxu0
        %v833 = vadd.f32 %v762, %v832
        %v834 = vpop.f32.mrb[0].mxu0
        %835 = vdwg.mxu0
        %v836 = vxor.u32 %v833, 2147483648
        %v837 = vmul.f32 %v836, 1.442695
        %v838 = vpow.pop %v837
        %v839 = vadd.f32 %v838, 1.0
        %v840 = vrcp.pop %v839
        %v841 = vmul.f32 1.0, %v840
        %842 = vst [vmem:[%s285] sm:$0x1] %v841
        %s843 = sand.u32 %s183, 1
        %s844 = scalar_lea.sflag [#allocation4], %s843
        %s845 = sand.u32 %s183, 1
        %s846 = scalar_lea.vmem [#allocation3], %s845
        // Predicated region
        $region49: #{tpu_custom_call.1} parent=47 // pred_check
          %p847 = pneg %p193
        $region50: #{tpu_custom_call.1} parent=47 // pred_check_branch
          %849 = sbr.rel (%p847) target = $region52
        $region51: #{tpu_custom_call.1} parent=47 // pred_region
          %s851 = ssub.s32 16, 16
          %852 = vsyncadd %s844, %s851
          %s853 = smul.addr %s23, 16
          %s854 = scalar_lea.hbm %s7, %s853
          %s856 = sshll.u32 %s846, 4
          %s857 = int_to_ptr.vmem [resolvable:$true] %s856
          %859 = dma.vmem_to_hbm [thread:$0]  %s857, 16, %s854, %s844
        $region52: #{tpu_custom_call.1} parent=47 // pred_fallthru
          _
      $region48: #{tpu_custom_call.1} parent=5 // pred_fallthru
        _
      %p860 = scmp.le.s32.totalorder 2, %s18
      // Predicated region
      $region53: #{tpu_custom_call.1} parent=5 // pred_check
        %p861 = pneg %p860
      $region54: #{tpu_custom_call.1} parent=5 // pred_check_branch
        %863 = sbr.rel (%p861) target = $region56
      $region55: #{tpu_custom_call.1} parent=5 // pred_region
        %s864 = ssub.s32 %s18, 2
        // Predicated region
        $region57: #{tpu_custom_call.1} parent=55 // pred_check
          %p865 = pneg %p199
        $region58: #{tpu_custom_call.1} parent=55 // pred_check_branch
          %867 = sbr.rel (%p865) target = $region60
        $region59: #{tpu_custom_call.1} parent=55 // pred_region
          %s868 = sand.u32 %s184, 1
          %s869 = scalar_lea.sflag [#allocation4], %s868
          %s870 = sand.u32 %s184, 1
          %s871 = scalar_lea.vmem [#allocation3], %s870
          %872 = dma.done %s869, 16
        $region60: #{tpu_custom_call.1} parent=55 // pred_fallthru
          _
      $region56: #{tpu_custom_call.1} parent=5 // pred_fallthru
        _
    $region6: #{tpu_custom_call.1} parent=1 // loop_footer
      %s22 = sadd.s32 1, %s18
    $region7: #{tpu_custom_call.1} parent=1 // loop_footer_branch
      %17 = sbr.rel target = $region3
    $region8: #{tpu_custom_call.1} parent=1 // loop_exit
      _
    %873 = vsyncpa [#allocation4], 1
    %s874 = scalar_lea.sflag [#allocation4], 1
    %875 = vsyncpa %s874, 1

</llo_original>
